<compile_context>
chip_gen: v7x
topology: tpu7x:2x2x1
jax: 0.10.0
libtpu: 0.0.40
codegen_flags: <defaults>
</compile_context>

<pallas_src>
import functools
import math

import jax
import jax.numpy as jnp
from jax.experimental import pallas as pl
from jax.experimental.pallas import tpu as pltpu

_EPS = float(jnp.finfo(jnp.float32).eps)
_TEN_OVER_LN10 = 10.0 / math.log(10.0)


def _sisnr_kernel(pred_ref, tgt_ref, out_ref,
                  sp_ref, st_ref, spp_ref, stt_ref, spt_ref,
                  *, true_t: int, tk: int):
    k = pl.program_id(1)  # time (reduction) axis, last in grid, "arbitrary"
    last_k = pl.num_programs(1) - 1

    @pl.when(k == 0)
    def _init():
        sp_ref[...] = jnp.zeros_like(sp_ref)
        st_ref[...] = jnp.zeros_like(st_ref)
        spp_ref[...] = jnp.zeros_like(spp_ref)
        stt_ref[...] = jnp.zeros_like(stt_ref)
        spt_ref[...] = jnp.zeros_like(spt_ref)

    p = pred_ref[...].astype(jnp.float32)
    t = tgt_ref[...].astype(jnp.float32)

    rem = true_t % tk
    if rem != 0:
        # Ragged last tile handled in-kernel: zero the out-of-range (unspecified
        # padding) columns instead of padding the full inputs in HBM.
        is_last = k == last_k
        valid = jnp.where(is_last, rem, tk)
        col = jax.lax.broadcasted_iota(jnp.int32, p.shape, 1)
        keep = col < valid
        p = jnp.where(keep, p, 0.0)
        t = jnp.where(keep, t, 0.0)

    # One fused multiply/accumulate sweep over the tile -> 5 per-row scalars.
    sp_ref[...] += jnp.sum(p, axis=-1, keepdims=True)
    st_ref[...] += jnp.sum(t, axis=-1, keepdims=True)
    spp_ref[...] += jnp.sum(p * p, axis=-1, keepdims=True)
    stt_ref[...] += jnp.sum(t * t, axis=-1, keepdims=True)
    spt_ref[...] += jnp.sum(p * t, axis=-1, keepdims=True)

    @pl.when(k == last_k)
    def _finalize():
        inv_t = 1.0 / float(true_t)
        s_p, s_t = sp_ref[...], st_ref[...]
        s_pp, s_tt, s_pt = spp_ref[...], stt_ref[...], spt_ref[...]

        # Centered (zero-mean over time) second moments; clamp against cancellation.
        spp_c = jnp.maximum(s_pp - s_p * s_p * inv_t, 0.0)
        stt_c = jnp.maximum(s_tt - s_t * s_t * inv_t, 0.0)
        spt_c = s_pt - s_p * s_t * inv_t

        alpha = (spt_c + _EPS) / (stt_c + _EPS)
        sig = alpha * alpha * stt_c                                   # ||alpha*tgt_c||^2
        noise = jnp.maximum(sig - 2.0 * alpha * spt_c + spp_c, 0.0)   # ||alpha*tgt_c - pred_c||^2
        ratio = (sig + _EPS) / (noise + _EPS)
        out_ref[...] = _TEN_OVER_LN10 * jnp.log(ratio)                # per-row SI-SNR in dB


def _choose_tiles(B: int, T: int, dtype) -> tuple[int, int]:
    itemsize = jnp.dtype(dtype).itemsize
    sub = 8 if itemsize >= 4 else 16  # sub-32-bit dtypes pack along sublanes

    # Batch tile: prefer >= 2 batch tiles so the "parallel" axis can shard across
    # v7x's two TensorCores, while keeping the tile sublane-aligned.
    if B % sub == 0:
        tb = sub
        for cand in (64, 32, 16):
            if cand % sub == 0 and B % cand == 0 and B // cand >= 2:
                tb = cand
                break
    else:
        tb = B  # full-extent block: always legal, minor sublane waste for tiny/odd B

    # Time tile: lane-aligned, with a byte FLOOR (~4 MiB/input/step to amortize the
    # ~0.35 us per-step overhead) and a CAP so 2 inputs x 2 pipeline buffers stay
    # under ~40 MiB (safe on v7x's 64 MiB physical VMEM; generous on v5e/v6e).
    t_ceil = -(-T // 128) * 128
    target_elems = (4 * 1024 * 1024) // itemsize   # ~4 MiB per input per step
    cap_elems = (10 * 1024 * 1024) // itemsize     # ~10 MiB per pipeline buffer
    tk_target = -(-max(target_elems // tb, 128) // 128) * 128
    tk_cap = max((cap_elems // tb) // 128 * 128, 128)
    tk = max(128, min(tk_target, tk_cap, t_ceil))
    return tb, tk


def sisnr_loss(predicted_audio: jax.Array, speaker_audio: jax.Array,
               *, max_time_block: int | None = None) -> jax.Array:
    """Returns scalar loss = -mean_over_batch(SI_SNR(pred, target))."""
    assert predicted_audio.shape == speaker_audio.shape
    assert predicted_audio.ndim == 2  # (B, T)
    B, T = predicted_audio.shape

    tb, tk = _choose_tiles(B, T, predicted_audio.dtype)
    if max_time_block is not None:
        tk = min(tk, max(128, (max_time_block // 128) * 128))

    grid = (B // tb, pl.cdiv(T, tk))
    kernel = functools.partial(_sisnr_kernel, true_t=T, tk=tk)

    per_row = pl.pallas_call(
        kernel,
        out_shape=jax.ShapeDtypeStruct((B, 1), jnp.float32),
        grid_spec=pltpu.PrefetchScalarGridSpec(
            num_scalar_prefetch=0,
            grid=grid,
            in_specs=[
                pl.BlockSpec((tb, tk), lambda i, k: (i, k)),
                pl.BlockSpec((tb, tk), lambda i, k: (i, k)),
            ],
            out_specs=pl.BlockSpec((tb, 1), lambda i, k: (i, 0)),
            scratch_shapes=[pltpu.VMEM((tb, 1), jnp.float32)] * 5,
        ),
        compiler_params=pltpu.CompilerParams(
            dimension_semantics=("parallel", "arbitrary"),
            vmem_limit_bytes=48 * 1024 * 1024,
        ),
    )(predicted_audio, speaker_audio)

    # Final batch mean + negation on a tiny (B,) vector is a trivial JAX op.
    return -jnp.mean(per_row[:, 0])


def _sisnr_loss_ref(pred, tgt):
    # Pure-JAX reference (matches torchmetrics ScaleInvariantSignalNoiseRatio, negated).
    eps = jnp.finfo(jnp.float32).eps
    pred = pred.astype(jnp.float32)
    tgt = tgt.astype(jnp.float32)
    pred = pred - jnp.mean(pred, axis=-1, keepdims=True)
    tgt = tgt - jnp.mean(tgt, axis=-1, keepdims=True)
    alpha = (jnp.sum(pred * tgt, -1, keepdims=True) + eps) / (
        jnp.sum(tgt * tgt, -1, keepdims=True) + eps
    )
    ts = alpha * tgt
    noise = ts - pred
    ratio = (jnp.sum(ts * ts, -1) + eps) / (jnp.sum(noise * noise, -1) + eps)
    return -jnp.mean(10.0 * jnp.log10(ratio))


if __name__ == "__main__":
    key = jax.random.PRNGKey(0)
    k1, k2 = jax.random.split(key)
    B, T = 4, 1000  # (batch, time); T not a multiple of 128 to exercise in-kernel masking
    speaker_audio = jax.random.normal(k1, (B, T), dtype=jnp.float32)
    # predicted = target + some noise, so SI-SNR is finite and well-conditioned
    predicted_audio = speaker_audio + 0.3 * jax.random.normal(k2, (B, T), dtype=jnp.float32)

    ref = _sisnr_loss_ref(predicted_audio, speaker_audio)

    # 1) default tiling (single ragged time tile for this small T)
    loss_default = sisnr_loss(predicted_audio, speaker_audio)
    jax.block_until_ready(loss_default)
    assert jnp.allclose(loss_default, ref, rtol=1e-4, atol=1e-4), (loss_default, ref)

    # 2) small time block to exercise multi-tile accumulation + ragged-last-tile masking
    loss_tiled = sisnr_loss(predicted_audio, speaker_audio, max_time_block=256)
    jax.block_until_ready(loss_tiled)
    assert jnp.allclose(loss_tiled, ref, rtol=1e-4, atol=1e-4), (loss_tiled, ref)

    print("KERNEL_OK")
</pallas_src>

<mosaic_0001>
module attributes {stable_mosaic.version = 11 : i64} {
  func.func @_sisnr_kernel(%arg0: i32, %arg1: i32, %arg2: memref<4x1024xf32, #tpu.memory_space<vmem>>, %arg3: memref<4x1024xf32, #tpu.memory_space<vmem>>, %arg4: memref<4x1xf32, #tpu.memory_space<vmem>>, %arg5: memref<4x1xf32, #tpu.memory_space<vmem>>, %arg6: memref<4x1xf32, #tpu.memory_space<vmem>>, %arg7: memref<4x1xf32, #tpu.memory_space<vmem>>, %arg8: memref<4x1xf32, #tpu.memory_space<vmem>>, %arg9: memref<4x1xf32, #tpu.memory_space<vmem>>) attributes {dimension_semantics = [#tpu.dimension_semantics<parallel>, #tpu.dimension_semantics<arbitrary>], iteration_bounds = array<i64: 1, 1>, scalar_prefetch = 0 : i64, scratch_operands = 5 : i64, tpu.core_type = #tpu.core_type<tc>, window_params = [{transform_indices = @transform_0, window_bounds = array<i64: 4, 1024>}, {transform_indices = @transform_1, window_bounds = array<i64: 4, 1024>}, {transform_indices = @transform_2, window_bounds = array<i64: 4, 1>}]} {
    %c0_i32 = arith.constant 0 : i32
    %0 = arith.cmpi eq, %arg1, %c0_i32 : i32
    %1 = arith.extui %0 : i1 to i32
    %c0_i32_0 = arith.constant 0 : i32
    %2 = arith.cmpi ne, %1, %c0_i32_0 : i32
    scf.if %2 {
      %cst_33 = arith.constant 0.000000e+00 : f32
      %45 = vector.broadcast %cst_33 : f32 to vector<4x1xf32>
      %c0_34 = arith.constant 0 : index
      %c0_35 = arith.constant 0 : index
      %46 = vector.load %arg5[%c0_34, %c0_35] : memref<4x1xf32, #tpu.memory_space<vmem>>, vector<4x1xf32>
      tpu.vector_store %arg5[%c0_34, %c0_35], %45 {strides = array<i32>} : memref<4x1xf32, #tpu.memory_space<vmem>>, vector<4x1xf32>,
      %cst_36 = arith.constant 0.000000e+00 : f32
      %47 = vector.broadcast %cst_36 : f32 to vector<4x1xf32>
      %c0_37 = arith.constant 0 : index
      %c0_38 = arith.constant 0 : index
      %48 = vector.load %arg6[%c0_37, %c0_38] : memref<4x1xf32, #tpu.memory_space<vmem>>, vector<4x1xf32>
      tpu.vector_store %arg6[%c0_37, %c0_38], %47 {strides = array<i32>} : memref<4x1xf32, #tpu.memory_space<vmem>>, vector<4x1xf32>,
      %cst_39 = arith.constant 0.000000e+00 : f32
      %49 = vector.broadcast %cst_39 : f32 to vector<4x1xf32>
      %c0_40 = arith.constant 0 : index
      %c0_41 = arith.constant 0 : index
      %50 = vector.load %arg7[%c0_40, %c0_41] : memref<4x1xf32, #tpu.memory_space<vmem>>, vector<4x1xf32>
      tpu.vector_store %arg7[%c0_40, %c0_41], %49 {strides = array<i32>} : memref<4x1xf32, #tpu.memory_space<vmem>>, vector<4x1xf32>,
      %cst_42 = arith.constant 0.000000e+00 : f32
      %51 = vector.broadcast %cst_42 : f32 to vector<4x1xf32>
      %c0_43 = arith.constant 0 : index
      %c0_44 = arith.constant 0 : index
      %52 = vector.load %arg8[%c0_43, %c0_44] : memref<4x1xf32, #tpu.memory_space<vmem>>, vector<4x1xf32>
      tpu.vector_store %arg8[%c0_43, %c0_44], %51 {strides = array<i32>} : memref<4x1xf32, #tpu.memory_space<vmem>>, vector<4x1xf32>,
      %cst_45 = arith.constant 0.000000e+00 : f32
      %53 = vector.broadcast %cst_45 : f32 to vector<4x1xf32>
      %c0_46 = arith.constant 0 : index
      %c0_47 = arith.constant 0 : index
      %54 = vector.load %arg9[%c0_46, %c0_47] : memref<4x1xf32, #tpu.memory_space<vmem>>, vector<4x1xf32>
      tpu.vector_store %arg9[%c0_46, %c0_47], %53 {strides = array<i32>} : memref<4x1xf32, #tpu.memory_space<vmem>>, vector<4x1xf32>,
    } else {
    }
    %c0 = arith.constant 0 : index
    %c0_1 = arith.constant 0 : index
    %3 = vector.load %arg2[%c0, %c0_1] : memref<4x1024xf32, #tpu.memory_space<vmem>>, vector<4x1024xf32>
    %c0_2 = arith.constant 0 : index
    %c0_3 = arith.constant 0 : index
    %4 = vector.load %arg3[%c0_2, %c0_3] : memref<4x1024xf32, #tpu.memory_space<vmem>>, vector<4x1024xf32>
    %c0_i32_4 = arith.constant 0 : i32
    %5 = arith.cmpi eq, %arg1, %c0_i32_4 : i32
    %c1000_i32 = arith.constant 1000 : i32
    %c1024_i32 = arith.constant 1024 : i32
    %6 = arith.select %5, %c1000_i32, %c1024_i32 : i32
    %7 = tpu.iota {dimensions = array<i32: 1>} : vector<4x1024xi32>
    %8 = vector.broadcast %6 : i32 to vector<4x1024xi32>
    %9 = arith.cmpi slt, %7, %8 : vector<4x1024xi32>
    %cst = arith.constant 0.000000e+00 : f32
    %10 = vector.broadcast %cst : f32 to vector<4x1024xf32>
    %11 = arith.select %9, %3, %10 : vector<4x1024xi1>, vector<4x1024xf32>
    %cst_5 = arith.constant 0.000000e+00 : f32
    %12 = vector.broadcast %cst_5 : f32 to vector<4x1024xf32>
    %13 = arith.select %9, %4, %12 : vector<4x1024xi1>, vector<4x1024xf32>
    %c0_6 = arith.constant 0 : index
    %c0_7 = arith.constant 0 : index
    %14 = vector.load %arg5[%c0_6, %c0_7] : memref<4x1xf32, #tpu.memory_space<vmem>>, vector<4x1xf32>
    %cst_8 = arith.constant dense<0.000000e+00> : vector<4xf32>
    %15 = vector.multi_reduction <add>, %11, %cst_8 [1] : vector<4x1024xf32> to vector<4xf32>
    %16 = vector.shape_cast %15 : vector<4xf32> to vector<4x1xf32>
    %17 = arith.addf %14, %16 : vector<4x1xf32>
    %c0_9 = arith.constant 0 : index
    %c0_10 = arith.constant 0 : index
    %18 = vector.load %arg5[%c0_9, %c0_10] : memref<4x1xf32, #tpu.memory_space<vmem>>, vector<4x1xf32>
    tpu.vector_store %arg5[%c0_9, %c0_10], %17 {strides = array<i32>} : memref<4x1xf32, #tpu.memory_space<vmem>>, vector<4x1xf32>,
    %c0_11 = arith.constant 0 : index
    %c0_12 = arith.constant 0 : index
    %19 = vector.load %arg6[%c0_11, %c0_12] : memref<4x1xf32, #tpu.memory_space<vmem>>, vector<4x1xf32>
    %cst_13 = arith.constant dense<0.000000e+00> : vector<4xf32>
    %20 = vector.multi_reduction <add>, %13, %cst_13 [1] : vector<4x1024xf32> to vector<4xf32>
    %21 = vector.shape_cast %20 : vector<4xf32> to vector<4x1xf32>
    %22 = arith.addf %19, %21 : vector<4x1xf32>
    %c0_14 = arith.constant 0 : index
    %c0_15 = arith.constant 0 : index
    %23 = vector.load %arg6[%c0_14, %c0_15] : memref<4x1xf32, #tpu.memory_space<vmem>>, vector<4x1xf32>
    tpu.vector_store %arg6[%c0_14, %c0_15], %22 {strides = array<i32>} : memref<4x1xf32, #tpu.memory_space<vmem>>, vector<4x1xf32>,
    %c0_16 = arith.constant 0 : index
    %c0_17 = arith.constant 0 : index
    %24 = vector.load %arg7[%c0_16, %c0_17] : memref<4x1xf32, #tpu.memory_space<vmem>>, vector<4x1xf32>
    %25 = arith.mulf %11, %11 : vector<4x1024xf32>
    %cst_18 = arith.constant dense<0.000000e+00> : vector<4xf32>
    %26 = vector.multi_reduction <add>, %25, %cst_18 [1] : vector<4x1024xf32> to vector<4xf32>
    %27 = vector.shape_cast %26 : vector<4xf32> to vector<4x1xf32>
    %28 = arith.addf %24, %27 : vector<4x1xf32>
    %c0_19 = arith.constant 0 : index
    %c0_20 = arith.constant 0 : index
    %29 = vector.load %arg7[%c0_19, %c0_20] : memref<4x1xf32, #tpu.memory_space<vmem>>, vector<4x1xf32>
    tpu.vector_store %arg7[%c0_19, %c0_20], %28 {strides = array<i32>} : memref<4x1xf32, #tpu.memory_space<vmem>>, vector<4x1xf32>,
    %c0_21 = arith.constant 0 : index
    %c0_22 = arith.constant 0 : index
    %30 = vector.load %arg8[%c0_21, %c0_22] : memref<4x1xf32, #tpu.memory_space<vmem>>, vector<4x1xf32>
    %31 = arith.mulf %13, %13 : vector<4x1024xf32>
    %cst_23 = arith.constant dense<0.000000e+00> : vector<4xf32>
    %32 = vector.multi_reduction <add>, %31, %cst_23 [1] : vector<4x1024xf32> to vector<4xf32>
    %33 = vector.shape_cast %32 : vector<4xf32> to vector<4x1xf32>
    %34 = arith.addf %30, %33 : vector<4x1xf32>
    %c0_24 = arith.constant 0 : index
    %c0_25 = arith.constant 0 : index
    %35 = vector.load %arg8[%c0_24, %c0_25] : memref<4x1xf32, #tpu.memory_space<vmem>>, vector<4x1xf32>
    tpu.vector_store %arg8[%c0_24, %c0_25], %34 {strides = array<i32>} : memref<4x1xf32, #tpu.memory_space<vmem>>, vector<4x1xf32>,
    %c0_26 = arith.constant 0 : index
    %c0_27 = arith.constant 0 : index
    %36 = vector.load %arg9[%c0_26, %c0_27] : memref<4x1xf32, #tpu.memory_space<vmem>>, vector<4x1xf32>
    %37 = arith.mulf %11, %13 : vector<4x1024xf32>
    %cst_28 = arith.constant dense<0.000000e+00> : vector<4xf32>
    %38 = vector.multi_reduction <add>, %37, %cst_28 [1] : vector<4x1024xf32> to vector<4xf32>
    %39 = vector.shape_cast %38 : vector<4xf32> to vector<4x1xf32>
    %40 = arith.addf %36, %39 : vector<4x1xf32>
    %c0_29 = arith.constant 0 : index
    %c0_30 = arith.constant 0 : index
    %41 = vector.load %arg9[%c0_29, %c0_30] : memref<4x1xf32, #tpu.memory_space<vmem>>, vector<4x1xf32>
    tpu.vector_store %arg9[%c0_29, %c0_30], %40 {strides = array<i32>} : memref<4x1xf32, #tpu.memory_space<vmem>>, vector<4x1xf32>,
    %c0_i32_31 = arith.constant 0 : i32
    %42 = arith.cmpi eq, %arg1, %c0_i32_31 : i32
    %43 = arith.extui %42 : i1 to i32
    %c0_i32_32 = arith.constant 0 : i32
    %44 = arith.cmpi ne, %43, %c0_i32_32 : i32
    scf.if %44 {
      %c0_33 = arith.constant 0 : index
      %c0_34 = arith.constant 0 : index
      %45 = vector.load %arg5[%c0_33, %c0_34] : memref<4x1xf32, #tpu.memory_space<vmem>>, vector<4x1xf32>
      %c0_35 = arith.constant 0 : index
      %c0_36 = arith.constant 0 : index
      %46 = vector.load %arg6[%c0_35, %c0_36] : memref<4x1xf32, #tpu.memory_space<vmem>>, vector<4x1xf32>
      %c0_37 = arith.constant 0 : index
      %c0_38 = arith.constant 0 : index
      %47 = vector.load %arg7[%c0_37, %c0_38] : memref<4x1xf32, #tpu.memory_space<vmem>>, vector<4x1xf32>
      %c0_39 = arith.constant 0 : index
      %c0_40 = arith.constant 0 : index
      %48 = vector.load %arg8[%c0_39, %c0_40] : memref<4x1xf32, #tpu.memory_space<vmem>>, vector<4x1xf32>
      %c0_41 = arith.constant 0 : index
      %c0_42 = arith.constant 0 : index
      %49 = vector.load %arg9[%c0_41, %c0_42] : memref<4x1xf32, #tpu.memory_space<vmem>>, vector<4x1xf32>
      %50 = arith.mulf %45, %45 : vector<4x1xf32>
      %cst_43 = arith.constant 1.000000e-03 : f32
      %51 = vector.broadcast %cst_43 : f32 to vector<4x1xf32>
      %52 = arith.mulf %50, %51 : vector<4x1xf32>
      %53 = arith.subf %47, %52 : vector<4x1xf32>
      %cst_44 = arith.constant 0.000000e+00 : f32
      %54 = vector.broadcast %cst_44 : f32 to vector<4x1xf32>
      %55 = arith.maximumf %53, %54 : vector<4x1xf32>
      %56 = arith.mulf %46, %46 : vector<4x1xf32>
      %cst_45 = arith.constant 1.000000e-03 : f32
      %57 = vector.broadcast %cst_45 : f32 to vector<4x1xf32>
      %58 = arith.mulf %56, %57 : vector<4x1xf32>
      %59 = arith.subf %48, %58 : vector<4x1xf32>
      %cst_46 = arith.constant 0.000000e+00 : f32
      %60 = vector.broadcast %cst_46 : f32 to vector<4x1xf32>
      %61 = arith.maximumf %59, %60 : vector<4x1xf32>
      %62 = arith.mulf %45, %46 : vector<4x1xf32>
      %cst_47 = arith.constant 1.000000e-03 : f32
      %63 = vector.broadcast %cst_47 : f32 to vector<4x1xf32>
      %64 = arith.mulf %62, %63 : vector<4x1xf32>
      %65 = arith.subf %49, %64 : vector<4x1xf32>
      %cst_48 = arith.constant 1.1920929E-7 : f32
      %66 = vector.broadcast %cst_48 : f32 to vector<4x1xf32>
      %67 = arith.addf %65, %66 : vector<4x1xf32>
      %cst_49 = arith.constant 1.1920929E-7 : f32
      %68 = vector.broadcast %cst_49 : f32 to vector<4x1xf32>
      %69 = arith.addf %61, %68 : vector<4x1xf32>
      %70 = arith.divf %67, %69 : vector<4x1xf32>
      %71 = arith.mulf %70, %70 : vector<4x1xf32>
      %72 = arith.mulf %71, %61 : vector<4x1xf32>
      %cst_50 = arith.constant 2.000000e+00 : f32
      %73 = vector.broadcast %cst_50 : f32 to vector<4x1xf32>
      %74 = arith.mulf %73, %70 : vector<4x1xf32>
      %75 = arith.mulf %74, %65 : vector<4x1xf32>
      %76 = arith.subf %72, %75 : vector<4x1xf32>
      %77 = arith.addf %76, %55 : vector<4x1xf32>
      %cst_51 = arith.constant 0.000000e+00 : f32
      %78 = vector.broadcast %cst_51 : f32 to vector<4x1xf32>
      %79 = arith.maximumf %77, %78 : vector<4x1xf32>
      %cst_52 = arith.constant 1.1920929E-7 : f32
      %80 = vector.broadcast %cst_52 : f32 to vector<4x1xf32>
      %81 = arith.addf %72, %80 : vector<4x1xf32>
      %cst_53 = arith.constant 1.1920929E-7 : f32
      %82 = vector.broadcast %cst_53 : f32 to vector<4x1xf32>
      %83 = arith.addf %79, %82 : vector<4x1xf32>
      %84 = arith.divf %81, %83 : vector<4x1xf32>
      %85 = math.log %84 : vector<4x1xf32>
      %cst_54 = arith.constant 4.34294462 : f32
      %86 = vector.broadcast %cst_54 : f32 to vector<4x1xf32>
      %87 = arith.mulf %86, %85 : vector<4x1xf32>
      %c0_55 = arith.constant 0 : index
      %c0_56 = arith.constant 0 : index
      %88 = vector.load %arg4[%c0_55, %c0_56] : memref<4x1xf32, #tpu.memory_space<vmem>>, vector<4x1xf32>
      tpu.vector_store %arg4[%c0_55, %c0_56], %87 {strides = array<i32>} : memref<4x1xf32, #tpu.memory_space<vmem>>, vector<4x1xf32>,
    } else {
    }
    return
  }
  func.func @transform_0(%arg0: i32, %arg1: i32) -> (i32, i32) {
    %c0_i32 = arith.constant 0 : i32
    return %arg0, %arg1 : i32, i32
  }
  func.func @transform_1(%arg0: i32, %arg1: i32) -> (i32, i32) {
    %c0_i32 = arith.constant 0 : i32
    return %arg0, %arg1 : i32, i32
  }
  func.func @transform_2(%arg0: i32, %arg1: i32) -> (i32, i32) {
    %c0_i32 = arith.constant 0 : i32
    %c0_i32_0 = arith.constant 0 : i32
    return %arg0, %c0_i32 : i32, i32
  }
}

</mosaic_0001>

<llo_original>
// kernel: tpu_custom_call.1
$region0: #{tpu_custom_call.1}
  #allocation0 [shape = 'u32[]', space=smem, size = 0x4, offset = 0x4, fixed_abs, tag = 'smem constant byte address 0x4 - core index']
  #allocation1 [shape = 'u32[144,128]{1,0:T(1,128)}', space=vmem, size = 0x12000, scoped, tag = 'internal scratch']
  #allocation2 [shape = 'f32[4,1]{1,0:T(4,128)}', space=vmem, size = 0x800, scoped, tag = 'scratch operand']
  #allocation3 [shape = 'f32[4,1]{1,0:T(4,128)}', space=vmem, size = 0x800, scoped, tag = 'scratch operand']
  #allocation4 [shape = 'f32[4,1]{1,0:T(4,128)}', space=vmem, size = 0x800, scoped, tag = 'scratch operand']
  #allocation5 [shape = 'f32[4,1]{1,0:T(4,128)}', space=vmem, size = 0x800, scoped, tag = 'scratch operand']
  #allocation6 [shape = 'f32[4,1]{1,0:T(4,128)}', space=vmem, size = 0x800, scoped, tag = 'scratch operand']
  %s0 = inlined_call_operand.hbm [shape: f32[4,1000], index: 0, kind: input, shape index: {}]
  %s1 = inlined_call_operand.hbm [shape: f32[4,1000], index: 1, kind: input, shape index: {}]
  %s2 = inlined_call_operand.vmem [shape: f32[4,1], index: 2, kind: output, shape index: {}]
  %s3 = sld [smem:[#allocation0]]
  $region34: #{tpu_custom_call.1} parent=0
    _
  %s5 = ssub.s32 1, %s3
  %s6 = scalar_select 0, %s5, %s3
  $region1: #{tpu_custom_call.1} parent=0
    #allocation7 [shape = 'u8[16384]{0}', space=vmem, size = 0x4000, scoped, tag = 'input window, operand 0, single buffered']
    #allocation8 [shape = 's32[1]{0}', space=sflag, size = 0x4, scoped, tag = 'scoped memory for tpu_custom_call.1']
    #allocation9 [shape = 'u8[16384]{0}', space=vmem, size = 0x4000, scoped, tag = 'input window, operand 1, single buffered']
    #allocation10 [shape = 's32[1]{0}', space=sflag, size = 0x4, scoped, tag = 'scoped memory for tpu_custom_call.1']
    %7 = vsyncpa [#allocation8], 0
    %8 = vsyncpa [#allocation10], 0
    // Predicated region
    $region2: #{tpu_custom_call.1} parent=1 // pred_check
      _
    $region3: #{tpu_custom_call.1} parent=1 // pred_check_branch
      %10 = sbr.rel (0) target = $region5
    $region4: #{tpu_custom_call.1} parent=1 // pred_region
      %s12 = ssub.s32 512, 512
      %13 = vsyncadd [#allocation8], %s12
      %s15 = sshll.u32 [#allocation7], 4
      %s16 = int_to_ptr.vmem [resolvable:$true] %s15
      %18 = dma.hbm_to_vmem [thread:$0]  %s0, 512, %s16, [#allocation8]
    $region5: #{tpu_custom_call.1} parent=1 // pred_fallthru
      _
    // Predicated region
    $region6: #{tpu_custom_call.1} parent=1 // pred_check
      _
    $region7: #{tpu_custom_call.1} parent=1 // pred_check_branch
      %20 = sbr.rel (0) target = $region9
    $region8: #{tpu_custom_call.1} parent=1 // pred_region
      %s22 = ssub.s32 512, 512
      %23 = vsyncadd [#allocation10], %s22
      %s25 = sshll.u32 [#allocation9], 4
      %s26 = int_to_ptr.vmem [resolvable:$true] %s25
      %28 = dma.hbm_to_vmem [thread:$0]  %s1, 512, %s26, [#allocation10]
    $region9: #{tpu_custom_call.1} parent=1 // pred_fallthru
      _
    // Predicated region
    $region10: #{tpu_custom_call.1} parent=1 // pred_check
      _
    $region11: #{tpu_custom_call.1} parent=1 // pred_check_branch
      %30 = sbr.rel (0) target = $region13
    $region12: #{tpu_custom_call.1} parent=1 // pred_region
      %31 = dma.done [#allocation8], 512
    $region13: #{tpu_custom_call.1} parent=1 // pred_fallthru
      _
    // Predicated region
    $region14: #{tpu_custom_call.1} parent=1 // pred_check
      _
    $region15: #{tpu_custom_call.1} parent=1 // pred_check_branch
      %33 = sbr.rel (0) target = $region17
    $region16: #{tpu_custom_call.1} parent=1 // pred_region
      %34 = dma.done [#allocation10], 512
    $region17: #{tpu_custom_call.1} parent=1 // pred_fallthru
      _
    %p35 = scmp.eq.s32.totalorder 0, 0
    // Predicated region
    $region18: #{tpu_custom_call.1} parent=1 // pred_check
      %p36 = pneg %p35
    $region19: #{tpu_custom_call.1} parent=1 // pred_check_branch
      %38 = sbr.rel (%p36) target = $region21
    $region20: #{tpu_custom_call.1} parent=1 // pred_region
      %vm39 = vcmask 3072
      %40 = vst.msk [vmem:[#allocation2] sm:$0xf] %vm39, 0.0
      %41 = vst.msk [vmem:[#allocation3] sm:$0xf] %vm39, 0.0
      %42 = vst.msk [vmem:[#allocation4] sm:$0xf] %vm39, 0.0
      %43 = vst.msk [vmem:[#allocation5] sm:$0xf] %vm39, 0.0
      %44 = vst.msk [vmem:[#allocation6] sm:$0xf] %vm39, 0.0
    $region21: #{tpu_custom_call.1} parent=1 // pred_fallthru
      _
    %v45 = vld [vmem:[#allocation7] sm:$0xff]
    %v46 = vld [vmem:[#allocation7 + $0x8] sm:$0xff]
    %v47 = vld [vmem:[#allocation7 + $0x10] sm:$0xff]
    %v48 = vld [vmem:[#allocation7 + $0x18] sm:$0xff]
    %v49 = vld [vmem:[#allocation9] sm:$0xff]
    %v50 = vld [vmem:[#allocation9 + $0x8] sm:$0xff]
    %v51 = vld [vmem:[#allocation9 + $0x10] sm:$0xff]
    %v52 = vld [vmem:[#allocation9 + $0x18] sm:$0xff]
    %s53 = scalar_select %p35, 1000, 1024
    %v54 = vlaneseq
    %v55 = vand.u32 %v54, 127
    %v56 = vadd.s32 %v55, 128
    %v57 = vadd.s32 %v55, 256
    %v58 = vadd.s32 %v55, 384
    %v59 = vadd.s32 %v55, 512
    %v60 = vadd.s32 %v55, 640
    %v61 = vadd.s32 %v55, 768
    %v62 = vadd.s32 %v55, 896
    %v63 = vstv %s53
    %vm64 = vcmp.lt.s32.totalorder %v55, %v63
    %vm65 = vcmp.lt.s32.totalorder %v56, %v63
    %vm66 = vcmp.lt.s32.totalorder %v57, %v63
    %vm67 = vcmp.lt.s32.totalorder %v58, %v63
    %vm68 = vcmp.lt.s32.totalorder %v59, %v63
    %vm69 = vcmp.lt.s32.totalorder %v60, %v63
    %vm70 = vcmp.lt.s32.totalorder %v61, %v63
    %vm71 = vcmp.lt.s32.totalorder %v62, %v63
    %v76 = vcombine.high %v45, %v45
    %v77 = vcombine.high %v46, %v46
    %v78 = vcombine.high %v47, %v47
    %v79 = vcombine.high %v48, %v48
    %v84 = vsel %vm64, %v45, 0.0
    %v85 = vsel %vm65, %v76, 0.0
    %v86 = vsel %vm66, %v46, 0.0
    %v87 = vsel %vm67, %v77, 0.0
    %v88 = vsel %vm68, %v47, 0.0
    %v89 = vsel %vm69, %v78, 0.0
    %v90 = vsel %vm70, %v48, 0.0
    %v91 = vsel %vm71, %v79, 0.0
    %v96 = vcombine.high %v49, %v49
    %v97 = vcombine.high %v50, %v50
    %v98 = vcombine.high %v51, %v51
    %v99 = vcombine.high %v52, %v52
    %v104 = vsel %vm64, %v49, 0.0
    %v105 = vsel %vm65, %v96, 0.0
    %v106 = vsel %vm66, %v50, 0.0
    %v107 = vsel %vm67, %v97, 0.0
    %v108 = vsel %vm68, %v51, 0.0
    %v109 = vsel %vm69, %v98, 0.0
    %v110 = vsel %vm70, %v52, 0.0
    %v111 = vsel %vm71, %v99, 0.0
    %v112 = vld [vmem:[#allocation2] sm:$0xf]
    %vm113 = vcmask 1043456
    %v114 = vsel %vm113, %v84, 0.0
    %v115 = vsel %vm113, %v85, 0.0
    %v116 = vadd.f32 %v114, %v115
    %v117 = vsel %vm113, %v86, 0.0
    %v118 = vadd.f32 %v116, %v117
    %v119 = vsel %vm113, %v87, 0.0
    %v120 = vadd.f32 %v118, %v119
    %v121 = vsel %vm113, %v88, 0.0
    %v122 = vadd.f32 %v120, %v121
    %v123 = vsel %vm113, %v89, 0.0
    %v124 = vadd.f32 %v122, %v123
    %v125 = vsel %vm113, %v90, 0.0
    %v126 = vadd.f32 %v124, %v125
    %v127 = vsel %vm113, %v91, 0.0
    %v128 = vadd.f32 %v126, %v127
    %129 = vadd.xlane.f32.xlu0 %v128
    %v130 = vpop.xlane.xlu0 %129
    %v131 = vadd.f32 %v112, %v130
    %vm132 = vcmask 3072
    %133 = vst.msk [vmem:[#allocation2] sm:$0xf] %vm132, %v131
    %v134 = vld [vmem:[#allocation3] sm:$0xf]
    %v135 = vsel %vm113, %v104, 0.0
    %v136 = vsel %vm113, %v105, 0.0
    %v137 = vadd.f32 %v135, %v136
    %v138 = vsel %vm113, %v106, 0.0
    %v139 = vadd.f32 %v137, %v138
    %v140 = vsel %vm113, %v107, 0.0
    %v141 = vadd.f32 %v139, %v140
    %v142 = vsel %vm113, %v108, 0.0
    %v143 = vadd.f32 %v141, %v142
    %v144 = vsel %vm113, %v109, 0.0
    %v145 = vadd.f32 %v143, %v144
    %v146 = vsel %vm113, %v110, 0.0
    %v147 = vadd.f32 %v145, %v146
    %v148 = vsel %vm113, %v111, 0.0
    %v149 = vadd.f32 %v147, %v148
    %150 = vadd.xlane.f32.xlu0 %v149
    %v151 = vpop.xlane.xlu0 %150
    %v152 = vadd.f32 %v134, %v151
    %153 = vst.msk [vmem:[#allocation3] sm:$0xf] %vm132, %v152
    %v154 = vld [vmem:[#allocation4] sm:$0xf]
    %v155 = vmul.f32 %v84, %v84
    %v156 = vmul.f32 %v85, %v85
    %v157 = vmul.f32 %v86, %v86
    %v158 = vmul.f32 %v87, %v87
    %v159 = vmul.f32 %v88, %v88
    %v160 = vmul.f32 %v89, %v89
    %v161 = vmul.f32 %v90, %v90
    %v162 = vmul.f32 %v91, %v91
    %v163 = vsel %vm113, %v155, 0.0
    %v164 = vsel %vm113, %v156, 0.0
    %v165 = vadd.f32 %v163, %v164
    %v166 = vsel %vm113, %v157, 0.0
    %v167 = vadd.f32 %v165, %v166
    %v168 = vsel %vm113, %v158, 0.0
    %v169 = vadd.f32 %v167, %v168
    %v170 = vsel %vm113, %v159, 0.0
    %v171 = vadd.f32 %v169, %v170
    %v172 = vsel %vm113, %v160, 0.0
    %v173 = vadd.f32 %v171, %v172
    %v174 = vsel %vm113, %v161, 0.0
    %v175 = vadd.f32 %v173, %v174
    %v176 = vsel %vm113, %v162, 0.0
    %v177 = vadd.f32 %v175, %v176
    %178 = vadd.xlane.f32.xlu0 %v177
    %v179 = vpop.xlane.xlu0 %178
    %v180 = vadd.f32 %v154, %v179
    %181 = vst.msk [vmem:[#allocation4] sm:$0xf] %vm132, %v180
    %v182 = vld [vmem:[#allocation5] sm:$0xf]
    %v183 = vmul.f32 %v104, %v104
    %v184 = vmul.f32 %v105, %v105
    %v185 = vmul.f32 %v106, %v106
    %v186 = vmul.f32 %v107, %v107
    %v187 = vmul.f32 %v108, %v108
    %v188 = vmul.f32 %v109, %v109
    %v189 = vmul.f32 %v110, %v110
    %v190 = vmul.f32 %v111, %v111
    %v191 = vsel %vm113, %v183, 0.0
    %v192 = vsel %vm113, %v184, 0.0
    %v193 = vadd.f32 %v191, %v192
    %v194 = vsel %vm113, %v185, 0.0
    %v195 = vadd.f32 %v193, %v194
    %v196 = vsel %vm113, %v186, 0.0
    %v197 = vadd.f32 %v195, %v196
    %v198 = vsel %vm113, %v187, 0.0
    %v199 = vadd.f32 %v197, %v198
    %v200 = vsel %vm113, %v188, 0.0
    %v201 = vadd.f32 %v199, %v200
    %v202 = vsel %vm113, %v189, 0.0
    %v203 = vadd.f32 %v201, %v202
    %v204 = vsel %vm113, %v190, 0.0
    %v205 = vadd.f32 %v203, %v204
    %206 = vadd.xlane.f32.xlu0 %v205
    %v207 = vpop.xlane.xlu0 %206
    %v208 = vadd.f32 %v182, %v207
    %209 = vst.msk [vmem:[#allocation5] sm:$0xf] %vm132, %v208
    %v210 = vld [vmem:[#allocation6] sm:$0xf]
    %v211 = vmul.f32 %v84, %v104
    %v212 = vmul.f32 %v85, %v105
    %v213 = vmul.f32 %v86, %v106
    %v214 = vmul.f32 %v87, %v107
    %v215 = vmul.f32 %v88, %v108
    %v216 = vmul.f32 %v89, %v109
    %v217 = vmul.f32 %v90, %v110
    %v218 = vmul.f32 %v91, %v111
    %v219 = vsel %vm113, %v211, 0.0
    %v220 = vsel %vm113, %v212, 0.0
    %v221 = vadd.f32 %v219, %v220
    %v222 = vsel %vm113, %v213, 0.0
    %v223 = vadd.f32 %v221, %v222
    %v224 = vsel %vm113, %v214, 0.0
    %v225 = vadd.f32 %v223, %v224
    %v226 = vsel %vm113, %v215, 0.0
    %v227 = vadd.f32 %v225, %v226
    %v228 = vsel %vm113, %v216, 0.0
    %v229 = vadd.f32 %v227, %v228
    %v230 = vsel %vm113, %v217, 0.0
    %v231 = vadd.f32 %v229, %v230
    %v232 = vsel %vm113, %v218, 0.0
    %v233 = vadd.f32 %v231, %v232
    %234 = vadd.xlane.f32.xlu0 %v233
    %v235 = vpop.xlane.xlu0 %234
    %v236 = vadd.f32 %v210, %v235
    %237 = vst.msk [vmem:[#allocation6] sm:$0xf] %vm132, %v236
    // Predicated region
    $region22: #{tpu_custom_call.1} parent=1 // pred_check
      %p238 = pneg %p35
    $region23: #{tpu_custom_call.1} parent=1 // pred_check_branch
      %240 = sbr.rel (%p238) target = $region25
    $region24: #{tpu_custom_call.1} parent=1 // pred_region
      %v241 = vld [vmem:[#allocation2] sm:$0xf]
      %v242 = vld [vmem:[#allocation3] sm:$0xf]
      %v243 = vld [vmem:[#allocation4] sm:$0xf]
      %v244 = vld [vmem:[#allocation5] sm:$0xf]
      %v245 = vld [vmem:[#allocation6] sm:$0xf]
      %v246 = vmul.f32 %v241, %v241
      %v247 = vmul.f32 %v246, 0.001
      %v248 = vsub.f32 %v243, %v247
      %v249 = vmax.f32 %v248, 0.0
      %v250 = vmul.f32 %v242, %v242
      %v251 = vmul.f32 %v250, 0.001
      %v252 = vsub.f32 %v244, %v251
      %v253 = vmax.f32 %v252, 0.0
      %v254 = vmul.f32 %v241, %v242
      %v255 = vmul.f32 %v254, 0.001
      %v256 = vsub.f32 %v245, %v255
      %v257 = vadd.f32 %v256, 1.1920929e-07
      %v258 = vadd.f32 %v253, 1.1920929e-07
      %v259 = vrcp.pop %v258
      %v260 = vmul.f32 %v257, %v259
      %v261 = vmul.f32 %v260, %v260
      %v262 = vmul.f32 %v261, %v253
      %v263 = vmul.f32 %v260, 2.0
      %v264 = vmul.f32 %v263, %v256
      %v265 = vsub.f32 %v262, %v264
      %v266 = vadd.f32 %v265, %v249
      %v267 = vmax.f32 %v266, 0.0
      %v268 = vadd.f32 %v262, 1.1920929e-07
      %v269 = vadd.f32 %v267, 1.1920929e-07
      %v270 = vrcp.pop %v269
      %v271 = vmul.f32 %v268, %v270
      %v272 = vlog2.pop %v271
      %v273 = vmul.f32 %v272, 0.6931472
      %v274 = vmul.f32 %v273, 4.3429446
      %275 = vst.msk [vmem:[%s2] sm:$0xf] %vm132, %v274
    $region25: #{tpu_custom_call.1} parent=1 // pred_fallthru
      _
    // Predicated region
    $region26: #{tpu_custom_call.1} parent=1 // pred_check
      _
    $region27: #{tpu_custom_call.1} parent=1 // pred_check_branch
      %277 = sbr.rel (0) target = $region29
    $region28: #{tpu_custom_call.1} parent=1 // pred_region
      _
    $region29: #{tpu_custom_call.1} parent=1 // pred_fallthru
      _
    // Predicated region
    $region30: #{tpu_custom_call.1} parent=1 // pred_check
      _
    $region31: #{tpu_custom_call.1} parent=1 // pred_check_branch
      %279 = sbr.rel (0) target = $region33
    $region32: #{tpu_custom_call.1} parent=1 // pred_region
      _
    $region33: #{tpu_custom_call.1} parent=1 // pred_fallthru
      _
    %280 = vsyncpa [#allocation8], 1
    %281 = vsyncpa [#allocation10], 1

</llo_original>
